<compile_context>
chip_gen: v5e
topology: v5e:2x2
jax: 0.10.0
libtpu: 0.0.40
codegen_flags: <defaults>
</compile_context>

<pallas_src>
import jax
import jax.numpy as jnp
from jax import lax
from jax.experimental import pallas as pl
from jax.experimental.pallas import tpu as pltpu

EPS = 1e-5


def _prescale_norm_kernel(g_ref, x_ref, o_ref):
    # g_ref: SMEM scalar parameter (shape (1,))
    # x_ref/o_ref: VMEM tiles of shape (tile_rows, D)
    x = x_ref[...]
    xf = x.astype(jnp.float32)
    sq = jnp.sum(xf * xf, axis=-1, keepdims=True)        # (tile_rows, 1), f32
    # 1 / max(||x||, eps) == min(rsqrt(sum(x^2)), 1/eps); rsqrt runs on the EUP.
    inv = jnp.minimum(lax.rsqrt(sq), 1.0 / EPS)          # (tile_rows, 1)
    # Fold g into the per-row scale, cast once (cheap: (tile_rows, 1)), and
    # multiply in the native dtype so bf16 tiles stay packed on v6e/v7x.
    scale = (inv * g_ref[0]).astype(o_ref.dtype)
    o_ref[...] = x * scale


def _round_up(a, b):
    return -(-int(a) // int(b)) * int(b)


def prescale_norm(x, g, *, tile_rows=None):
    """x: (B, S, D); g: (1,) scalar param.  Returns x / clamp(||x||_2, eps) * g."""
    B, S, D = x.shape
    R = B * S
    x2 = x.reshape(R, D)

    itemsize = jnp.dtype(x.dtype).itemsize
    # Sublane packing: 8 rows/vreg for 32-bit, 16 for bf16, 32 for int8/fp8.
    row_align = max(8, 32 // itemsize)

    # Generation-aware physical VMEM; conservative fallback = v7x's 64 MiB.
    try:
        phys_vmem = int(pltpu.get_tpu_info().vmem_capacity_bytes)
    except Exception:  # pragma: no cover - older jax or non-TPU tracing
        phys_vmem = 64 * 1024 * 1024
    vmem_ceiling = (phys_vmem * 3) // 4  # headroom for compiler scratch

    bytes_per_row = max(D * itemsize, 1)
    # Per-row VMEM footprint: double-buffered input + output blocks (4x block)
    # plus the f32 working copy used for the sum-of-squares reduction.
    budget_per_row = 4 * bytes_per_row + 4 * D

    if tile_rows is None:
        # Bytes-based target: ~4 MiB per block (cap 8192 rows).  At 2-4 MiB
        # the ~0.35 us per-grid-step overhead is <15% of the HBM stream time
        # even on v7x (3.2 TB/s); v5e/v6e sit near their measured roofline.
        target_bytes = 4 * 1024 * 1024
        tile_rows = max(row_align, min(8192, target_bytes // bytes_per_row))

    # Clamp so all live buffers fit under the generation-specific VMEM cap.
    max_rows = max(
        row_align,
        ((vmem_ceiling - (4 << 20)) // budget_per_row) // row_align * row_align,
    )
    tile_rows = min(int(tile_rows), int(max_rows))

    # Align to the dtype sublane-packing multiple; never exceed (aligned) R.
    tile_rows = _round_up(tile_rows, row_align)
    tile_rows = min(tile_rows, _round_up(R, row_align))

    # cdiv grid; a partial last block is handled by Pallas (masked writeback),
    # so no wrapper-side pad / slice (no extra HBM passes).
    grid = int(pl.cdiv(R, tile_rows))

    tile_bytes = tile_rows * bytes_per_row
    f32_bytes = tile_rows * D * 4
    vmem_limit = int(min(vmem_ceiling, 4 * tile_bytes + 2 * f32_bytes + (4 << 20)))

    cost = pl.CostEstimate(
        flops=3 * R * D,                     # x*x, row-sum, scale-mul (rough)
        transcendentals=R,                   # one rsqrt per row
        bytes_accessed=2 * R * D * itemsize,
    )

    out = pl.pallas_call(
        _prescale_norm_kernel,
        out_shape=jax.ShapeDtypeStruct((R, D), x.dtype),
        grid=(grid,),
        in_specs=[
            pl.BlockSpec(memory_space=pltpu.SMEM),            # g (scalar param)
            pl.BlockSpec((tile_rows, D), lambda i: (i, 0)),   # x row tile
        ],
        out_specs=pl.BlockSpec((tile_rows, D), lambda i: (i, 0)),
        compiler_params=pltpu.CompilerParams(
            # One parallel row axis: shards across both TCs on v7x; no-op on
            # v5e/v6e.  (If a trace shows a single busy TC on v7x, switch to
            # pltpu.CORE_PARALLEL.)
            dimension_semantics=("parallel",),
            vmem_limit_bytes=vmem_limit,
        ),
        cost_estimate=cost,
    )(g, x2)

    return out.reshape(B, S, D)


def prescale_norm_ref(x, g):
    xf = x.astype(jnp.float32)
    n = jnp.linalg.norm(xf, axis=-1, keepdims=True)
    n = jnp.maximum(n, EPS)
    return (xf / n * g[0]).astype(x.dtype)


if __name__ == "__main__":
    key = jax.random.PRNGKey(0)

    # Deterministic parameter init, matching nn.Parameter(torch.ones(1)).
    g = jnp.ones((1,), dtype=jnp.float32)

    ok = True

    # Case 1: small, lane-dense (D = 128), f32.
    k1, k2, k3 = jax.random.split(key, 3)
    B, S, D = 2, 8, 128
    x = jax.random.normal(k1, (B, S, D), dtype=jnp.float32)
    y = jax.block_until_ready(prescale_norm(x, g))
    y_ref = prescale_norm_ref(x, g)
    ok &= y.shape == (B, S, D)
    ok &= bool(jnp.allclose(y, y_ref, atol=1e-5, rtol=1e-4))

    # Case 2: row count not a multiple of the sublane alignment
    # (exercises the cdiv grid + partial-last-block path, no wrapper pad).
    B2, S2, D2 = 3, 5, 128
    x2 = jax.random.normal(k2, (B2, S2, D2), dtype=jnp.float32)
    y2 = jax.block_until_ready(prescale_norm(x2, g))
    y2_ref = prescale_norm_ref(x2, g)
    ok &= y2.shape == (B2, S2, D2)
    ok &= bool(jnp.allclose(y2, y2_ref, atol=1e-5, rtol=1e-4))

    # Case 3: bf16 input (row alignment 16; f32 reduction, bf16 store path).
    x3 = jax.random.normal(k3, (2, 8, 128), dtype=jnp.float32).astype(jnp.bfloat16)
    y3 = jax.block_until_ready(prescale_norm(x3, g))
    y3_ref = prescale_norm_ref(x3, g)
    ok &= bool(
        jnp.allclose(
            y3.astype(jnp.float32), y3_ref.astype(jnp.float32), atol=2e-2, rtol=2e-2
        )
    )

    assert ok, "mismatch vs reference"
    print("KERNEL_OK")
</pallas_src>

<mosaic_0001>
module attributes {stable_mosaic.version = 11 : i64} {
  func.func @_prescale_norm_kernel(%arg0: i32, %arg1: memref<1xf32, #tpu.memory_space<smem>>, %arg2: memref<16x128xf32, #tpu.memory_space<vmem>>, %arg3: memref<16x128xf32, #tpu.memory_space<vmem>>) attributes {dimension_semantics = [#tpu.dimension_semantics<parallel>], iteration_bounds = array<i64: 1>, scalar_prefetch = 0 : i64, scratch_operands = 0 : i64, tpu.core_type = #tpu.core_type<tc>, window_params = [{transform_indices = @transform_0, window_bounds = array<i64: 1>}, {transform_indices = @transform_1, window_bounds = array<i64: 16, 128>}, {transform_indices = @transform_2, window_bounds = array<i64: 16, 128>}]} {
    %c0 = arith.constant 0 : index
    %c0_0 = arith.constant 0 : index
    %0 = vector.load %arg2[%c0, %c0_0] : memref<16x128xf32, #tpu.memory_space<vmem>>, vector<16x128xf32>
    %1 = arith.mulf %0, %0 : vector<16x128xf32>
    %cst = arith.constant dense<0.000000e+00> : vector<16xf32>
    %2 = vector.multi_reduction <add>, %1, %cst [1] : vector<16x128xf32> to vector<16xf32>
    %3 = vector.shape_cast %2 : vector<16xf32> to vector<16x1xf32>
    %4 = math.rsqrt %3 : vector<16x1xf32>
    %cst_1 = arith.constant 1.000000e+05 : f32
    %5 = vector.broadcast %cst_1 : f32 to vector<16x1xf32>
    %6 = arith.minimumf %4, %5 : vector<16x1xf32>
    %c0_2 = arith.constant 0 : index
    %7 = memref.load %arg1[%c0_2] : memref<1xf32, #tpu.memory_space<smem>>
    %8 = vector.broadcast %7 : f32 to vector<16x1xf32>
    %9 = arith.mulf %6, %8 : vector<16x1xf32>
    %10 = vector.broadcast %9 : vector<16x1xf32> to vector<16x128xf32>
    %11 = arith.mulf %0, %10 : vector<16x128xf32>
    %c0_3 = arith.constant 0 : index
    %c0_4 = arith.constant 0 : index
    %12 = vector.load %arg3[%c0_3, %c0_4] : memref<16x128xf32, #tpu.memory_space<vmem>>, vector<16x128xf32>
    tpu.vector_store %arg3[%c0_3, %c0_4], %11 {strides = array<i32>} : memref<16x128xf32, #tpu.memory_space<vmem>>, vector<16x128xf32>,
    return
  }
  func.func @transform_0(%arg0: i32) -> i32 {
    %c0_i32 = arith.constant 0 : i32
    %c0_i32_0 = arith.constant 0 : i32
    return %c0_i32 : i32
  }
  func.func @transform_1(%arg0: i32) -> (i32, i32) {
    %c0_i32 = arith.constant 0 : i32
    %c0_i32_0 = arith.constant 0 : i32
    return %arg0, %c0_i32 : i32, i32
  }
  func.func @transform_2(%arg0: i32) -> (i32, i32) {
    %c0_i32 = arith.constant 0 : i32
    %c0_i32_0 = arith.constant 0 : i32
    return %arg0, %c0_i32 : i32, i32
  }
}

</mosaic_0001>

<llo_original>
// kernel: tpu_custom_call.1
$region0: #{tpu_custom_call.1}
  #allocation0 [shape = 'u32[]', space=smem, size = 0x4, offset = 0x4, fixed_abs, tag = 'smem constant byte address 0x4 - core index']
  #allocation1 [shape = 'u32[72,128]{1,0:T(1,128)}', space=vmem, size = 0x9000, scoped, tag = 'internal scratch']
  #allocation2 [shape = 'f32[1]{0:T(128)S(6)}', space=smem, size = 0x200, scoped, tag = 'scoped memory for tpu_custom_call.1']
  %s0 = inlined_call_operand.<no memory space> [shape: f32[1], index: 0, kind: input, shape index: {}]
  %s1 = inlined_call_operand.hbm [shape: f32[16,128], index: 1, kind: input, shape index: {}]
  %s2 = inlined_call_operand.hbm [shape: f32[16,128], index: 2, kind: output, shape index: {}]
  %s3 = sld [smem:[#allocation0]]
  $region22: #{tpu_custom_call.1} parent=0
    _
  %s5 = ssub.s32 1, %s3
  %s6 = scalar_select 0, %s5, %s3
  %7 = sst [smem:[#allocation2]] %s0
  $region1: #{tpu_custom_call.1} parent=0
    #allocation3 [shape = 'u8[8192]{0}', space=vmem, size = 0x2000, scoped, tag = 'input window, operand 1, single buffered']
    #allocation4 [shape = 's32[1]{0}', space=sflag, size = 0x4, scoped, tag = 'scoped memory for tpu_custom_call.1']
    #allocation5 [shape = 's32[1]{0}', space=sflag, size = 0x4, scoped, tag = 'scoped memory for tpu_custom_call.1']
    #allocation6 [shape = 'u8[8192]{0}', space=vmem, size = 0x2000, scoped, tag = 'output window, operand 0, single buffered']
    %8 = vsyncpa [#allocation4], 0
    %9 = vsyncpa [#allocation5], 0
    // Predicated region
    $region2: #{tpu_custom_call.1} parent=1 // pred_check
      _
    $region3: #{tpu_custom_call.1} parent=1 // pred_check_branch
      %11 = sbr.rel (0) target = $region5
    $region4: #{tpu_custom_call.1} parent=1 // pred_region
      _
    $region5: #{tpu_custom_call.1} parent=1 // pred_fallthru
      _
    // Predicated region
    $region6: #{tpu_custom_call.1} parent=1 // pred_check
      _
    $region7: #{tpu_custom_call.1} parent=1 // pred_check_branch
      %13 = sbr.rel (0) target = $region9
    $region8: #{tpu_custom_call.1} parent=1 // pred_region
      %15 = vsyncadd [#allocation4], 0
      %s16 = sshll.u32 %s1, 4
      %s17 = int_to_ptr.hbm [resolvable:$true] %s16
      %s18 = sshll.u32 [#allocation3], 4
      %s19 = int_to_ptr.vmem [resolvable:$true] %s18
      %24 = dma.hbm_to_vmem [thread:$0]  %s17, 256, %s19, [#allocation4], 128, 128, 8
    $region9: #{tpu_custom_call.1} parent=1 // pred_fallthru
      _
    // Predicated region
    $region10: #{tpu_custom_call.1} parent=1 // pred_check
      _
    $region11: #{tpu_custom_call.1} parent=1 // pred_check_branch
      %26 = sbr.rel (0) target = $region13
    $region12: #{tpu_custom_call.1} parent=1 // pred_region
      %28 = dma.done [#allocation4], 256
    $region13: #{tpu_custom_call.1} parent=1 // pred_fallthru
      _
    %v29 = vld [vmem:[#allocation3] sm:$0xff]
    %v30 = vld [vmem:[#allocation3 + $0x8] sm:$0xff]
    %v31 = vmul.f32 %v29, %v29
    %v32 = vmul.f32 %v30, %v30
    %33 = vadd.xlane.f32.xlu0 %v31
    %v34 = vpop.xlane.xlu0 %33
    %35 = vadd.xlane.f32.xlu0 %v32
    %v36 = vpop.xlane.xlu0 %35
    %v37 = vrsqrt.pop %v34
    %v38 = vmul.f32 %v37, %v34
    %v39 = vmul.f32 %v38, %v37
    %v40 = vmul.f32 0.5, %v39
    %v41 = vsub.f32 1.5, %v40
    %v42 = vmul.f32 %v37, %v41
    %vm43 = vweird.f32 %v34
    %vm44 = vweird.f32 %v37
    %vm45 = vmor %vm43, %vm44
    %v46 = vsel %vm45, %v37, %v42
    %v47 = vrsqrt.pop %v36
    %v48 = vmul.f32 %v47, %v36
    %v49 = vmul.f32 %v48, %v47
    %v50 = vmul.f32 0.5, %v49
    %v51 = vsub.f32 1.5, %v50
    %v52 = vmul.f32 %v47, %v51
    %vm53 = vweird.f32 %v36
    %vm54 = vweird.f32 %v47
    %vm55 = vmor %vm53, %vm54
    %v56 = vsel %vm55, %v47, %v52
    %v57 = vmin.f32 %v46, 100000.0
    %v58 = vmin.f32 %v56, 100000.0
    %s59 = sld [smem:[#allocation2]]
    %v60 = vstv %s59
    %v61 = vmul.f32 %v57, %v60
    %v62 = vmul.f32 %v58, %v60
    %v63 = vmul.f32 %v29, %v61
    %v64 = vmul.f32 %v30, %v62
    %65 = vst [vmem:[#allocation6] sm:$0xff] %v63
    %66 = vst [vmem:[#allocation6 + $0x8] sm:$0xff] %v64
    // Predicated region
    $region14: #{tpu_custom_call.1} parent=1 // pred_check
      _
    $region15: #{tpu_custom_call.1} parent=1 // pred_check_branch
      %68 = sbr.rel (0) target = $region17
    $region16: #{tpu_custom_call.1} parent=1 // pred_region
      %70 = vsyncadd [#allocation5], 0
      %s71 = sshll.u32 [#allocation6], 4
      %s72 = int_to_ptr.vmem [resolvable:$true] %s71
      %s73 = sshll.u32 %s2, 4
      %s74 = int_to_ptr.hbm [resolvable:$true] %s73
      %79 = dma.vmem_to_hbm [thread:$0]  %s72, 256, %s74, [#allocation5], 128, 128, 8
    $region17: #{tpu_custom_call.1} parent=1 // pred_fallthru
      _
    // Predicated region
    $region18: #{tpu_custom_call.1} parent=1 // pred_check
      _
    $region19: #{tpu_custom_call.1} parent=1 // pred_check_branch
      %81 = sbr.rel (0) target = $region21
    $region20: #{tpu_custom_call.1} parent=1 // pred_region
      %83 = dma.done [#allocation5], 256
    $region21: #{tpu_custom_call.1} parent=1 // pred_fallthru
      _
    %84 = vsyncpa [#allocation4], 1
    %85 = vsyncpa [#allocation5], 1

</llo_original>
